<compile_context>
chip_gen: v5e
topology: v5e:2x2
jax: 0.10.0
libtpu: 0.0.40
codegen_flags: <defaults>
</compile_context>

<pallas_src>
import functools

import jax
import jax.numpy as jnp
from jax import lax
from jax.experimental import pallas as pl
from jax.experimental.pallas import tpu as pltpu


MAX_TILE_ROWS = 2048   # (2048,128) f32 block = 1 MiB; 4 inputs x 2 bufs = 8 MiB VMEM


def _default_num_cores():
    """2 TensorCores only on v7x-class chips; v5e/v6e have a single TC."""
    try:
        kind = jax.devices()[0].device_kind.lower()
    except Exception:
        return 1
    return 2 if "v7" in kind else 1


def _sublane_multiple(dtype):
    # f32 -> 8, bf16/f16 -> 16, fp8/int8 -> 32 (packed sublane tiling).
    return max(8, 32 // jnp.dtype(dtype).itemsize)


def _flexible_loss_kernel(y1_ref, y2_ref, p1_ref, p2_ref, out_ref, acc_ref, *,
                          diversity_weight, rows, tile_r, tiles_per_core,
                          need_mask, two_axis):
    if two_axis:
        k = pl.program_id(1)
        nk = pl.num_programs(1)
        tile_idx = pl.program_id(0) * tiles_per_core + k
    else:
        k = pl.program_id(0)
        nk = pl.num_programs(0)
        tile_idx = k

    @pl.when(k == 0)
    def _init():
        acc_ref[...] = jnp.zeros_like(acc_ref)

    y1 = y1_ref[...].astype(jnp.float32)
    y2 = y2_ref[...].astype(jnp.float32)
    p1 = p1_ref[...].astype(jnp.float32)
    p2 = p2_ref[...].astype(jnp.float32)

    # Sorting a 2-element pair == (min, max).
    t_lo = jnp.minimum(y1, y2)
    t_hi = jnp.maximum(y1, y2)
    p_lo = jnp.minimum(p1, p2)
    p_hi = jnp.maximum(p1, p2)

    d_lo = p_lo - t_lo
    d_hi = p_hi - t_hi
    # (p_hi - p_lo) - (t_hi - t_lo) == d_hi - d_lo  -> saves 2 subs / element.
    c = (jnp.abs(d_lo) + jnp.abs(d_hi)
         + jnp.float32(diversity_weight) * jnp.abs(d_hi - d_lo))

    if need_mask:
        # Zero contributions from rows past the true row count (partial last
        # tile over-read and/or duplicated tiles from core rounding).
        row0 = tile_idx * tile_r
        gidx = row0 + lax.broadcasted_iota(jnp.int32, c.shape, 0)
        c = jnp.where(gidx < rows, c, 0.0)

    # Fold sublane groups into an (8,128) accumulator: pure VPU adds, no
    # tile-sized accumulator read/write per step.
    acc_ref[...] += jnp.sum(c.reshape(tile_r // 8, 8, 128), axis=0)

    @pl.when(k == nk - 1)
    def _finalize():
        out_ref[...] = acc_ref[...]


def flexible_loss_sorted(y1, y2, y_hat1, y_hat2, diversity_weight=0.1,
                         max_tile_rows=MAX_TILE_ROWS, num_cores=None):
    """Pallas implementation of FlexibleLossSorted.forward. Inputs: 1-D [B]."""
    y1 = jnp.ravel(y1)
    y2 = jnp.ravel(y2)
    yh1 = jnp.ravel(y_hat1)
    yh2 = jnp.ravel(y_hat2)
    assert y1.shape == y2.shape == yh1.shape == yh2.shape
    b = y1.shape[0]
    assert b > 0

    if num_cores is None:
        num_cores = _default_num_cores()

    # View the batch as (rows, 128) lanes. A 128-aligned batch is reshaped for
    # free (no HBM copy); otherwise pad only up to the next multiple of 128.
    # TODO(synk): a fully copy-free ragged-lane path would need 1-D blocks or
    # manual DMA from a raw HBM ref; the pad here is at most 127 elements.
    rows = -(-b // 128)
    lanes_padded = rows * 128

    def prep(x):
        if lanes_padded != b:
            x = jnp.pad(x, (0, lanes_padded - b))   # zero pads contribute 0
        return x.reshape(rows, 128)

    # Row tile: multiple of the dtype's packed-sublane requirement.
    sub = max(_sublane_multiple(x.dtype) for x in (y1, y2, yh1, yh2))
    tile_r = int(min(int(max_tile_rows), -(-rows // sub) * sub))
    tile_r = max(sub, (tile_r // sub) * sub)
    num_tiles = -(-rows // tile_r)

    if num_cores < 2 or num_tiles < 2:
        num_cores = 1

    if num_cores == 1:
        tiles_per_core = num_tiles
        grid = (num_tiles,)
        in_idx = lambda k: (k, 0)
        out_idx = lambda k: (0, 0)
        dim_sem = ("arbitrary",)
        two_axis = False
    else:
        tiles_per_core = -(-num_tiles // num_cores)
        grid = (num_cores, tiles_per_core)
        last_tile = num_tiles - 1
        # Clamp duplicated tiles (from rounding up to num_cores) onto a valid
        # block; their contribution is zeroed by the in-kernel row mask.
        in_idx = lambda c, k: (jnp.minimum(c * tiles_per_core + k, last_tile), 0)
        out_idx = lambda c, k: (c, 0)
        dim_sem = (pltpu.CORE_PARALLEL, pltpu.ARBITRARY)
        two_axis = True

    covered_rows = num_cores * tiles_per_core * tile_r
    need_mask = covered_rows > rows

    kernel = functools.partial(
        _flexible_loss_kernel,
        diversity_weight=float(diversity_weight),
        rows=int(rows),
        tile_r=int(tile_r),
        tiles_per_core=int(tiles_per_core),
        need_mask=bool(need_mask),
        two_axis=bool(two_axis),
    )

    in_spec = pl.BlockSpec((tile_r, 128), in_idx)
    bytes_in = sum(lanes_padded * jnp.dtype(x.dtype).itemsize
                   for x in (y1, y2, yh1, yh2))
    cost = pl.CostEstimate(flops=10 * lanes_padded, transcendentals=0,
                           bytes_accessed=bytes_in + num_cores * 8 * 128 * 4)

    out = pl.pallas_call(
        kernel,
        out_shape=jax.ShapeDtypeStruct((num_cores * 8, 128), jnp.float32),
        grid_spec=pltpu.PrefetchScalarGridSpec(
            num_scalar_prefetch=0,
            grid=grid,
            in_specs=[in_spec, in_spec, in_spec, in_spec],
            out_specs=pl.BlockSpec((8, 128), out_idx),
            scratch_shapes=[pltpu.VMEM((8, 128), jnp.float32)],
        ),
        compiler_params=pltpu.CompilerParams(dimension_semantics=dim_sem),
        cost_estimate=cost,
    )(prep(y1), prep(y2), prep(yh1), prep(yh2))

    # Tiny final reduction (<= 2 KiB) as a trivial XLA op; divide by true batch.
    return jnp.sum(out) * jnp.float32(1.0 / b)


def _reference_loss(y1, y2, y_hat1, y_hat2, diversity_weight=0.1):
    t = jnp.sort(jnp.stack([y1, y2], axis=1).astype(jnp.float32), axis=1)
    p = jnp.sort(jnp.stack([y_hat1, y_hat2], axis=1).astype(jnp.float32), axis=1)
    t1, t2 = t[:, 0], t[:, 1]
    p1, p2 = p[:, 0], p[:, 1]
    loss1 = jnp.mean(jnp.abs(p1 - t1))
    loss2 = jnp.mean(jnp.abs(p2 - t2))
    diff_loss = jnp.mean(jnp.abs(jnp.abs(p1 - p2) - jnp.abs(t1 - t2)))
    return loss1 + loss2 + diversity_weight * diff_loss


if __name__ == "__main__":
    key = jax.random.PRNGKey(0)

    def make_inputs(b, key, dtype=jnp.float32):
        k1, k2, k3, k4 = jax.random.split(key, 4)
        mk = lambda k: (jax.random.normal(k, (b,), jnp.float32) * 3.0 + 10.0).astype(dtype)
        return mk(k1), mk(k2), mk(k3), mk(k4)

    ka, kb, kc, kd = jax.random.split(key, 4)

    # Case 1: batch NOT a multiple of 128 -> minimal pad + in-kernel row mask.
    y1, y2, yh1, yh2 = make_inputs(300, ka)
    out = jax.block_until_ready(flexible_loss_sorted(y1, y2, yh1, yh2, 0.1))
    ref = _reference_loss(y1, y2, yh1, yh2, 0.1)
    assert jnp.allclose(out, ref, rtol=1e-5, atol=1e-5), (out, ref)

    # Case 2: aligned batch, tiny tile -> zero-copy path, multi-step accumulate.
    y1, y2, yh1, yh2 = make_inputs(4096, kb)
    out2 = jax.block_until_ready(
        flexible_loss_sorted(y1, y2, yh1, yh2, 0.25, max_tile_rows=8))
    ref2 = _reference_loss(y1, y2, yh1, yh2, 0.25)
    assert jnp.allclose(out2, ref2, rtol=1e-5, atol=1e-5), (out2, ref2)

    # Case 3: aligned batch with a partial last row-tile (masked, no padding).
    y1, y2, yh1, yh2 = make_inputs(128 * 20, kc)
    out3 = jax.block_until_ready(
        flexible_loss_sorted(y1, y2, yh1, yh2, 0.1, max_tile_rows=16))
    ref3 = _reference_loss(y1, y2, yh1, yh2, 0.1)
    assert jnp.allclose(out3, ref3, rtol=1e-5, atol=1e-5), (out3, ref3)

    # Case 4: bf16 inputs (half the HBM traffic); tile rows rounded to 16.
    y1, y2, yh1, yh2 = make_inputs(4096, kd, dtype=jnp.bfloat16)
    out4 = jax.block_until_ready(flexible_loss_sorted(y1, y2, yh1, yh2, 0.1))
    ref4 = _reference_loss(y1, y2, yh1, yh2, 0.1)
    assert jnp.allclose(out4, ref4, rtol=1e-5, atol=1e-5), (out4, ref4)

    print("KERNEL_OK")
</pallas_src>

<mosaic_0001>
module attributes {stable_mosaic.version = 11 : i64} {
  func.func @_flexible_loss_kernel(%arg0: i32, %arg1: memref<8x128xf32, #tpu.memory_space<vmem>>, %arg2: memref<8x128xf32, #tpu.memory_space<vmem>>, %arg3: memref<8x128xf32, #tpu.memory_space<vmem>>, %arg4: memref<8x128xf32, #tpu.memory_space<vmem>>, %arg5: memref<8x128xf32, #tpu.memory_space<vmem>>, %arg6: memref<8x128xf32, #tpu.memory_space<vmem>>) attributes {dimension_semantics = [#tpu.dimension_semantics<arbitrary>], iteration_bounds = array<i64: 1>, scalar_prefetch = 0 : i64, scratch_operands = 1 : i64, tpu.core_type = #tpu.core_type<tc>, window_params = [{transform_indices = @transform_0, window_bounds = array<i64: 8, 128>}, {transform_indices = @transform_1, window_bounds = array<i64: 8, 128>}, {transform_indices = @transform_2, window_bounds = array<i64: 8, 128>}, {transform_indices = @transform_3, window_bounds = array<i64: 8, 128>}, {pipeline_mode = #tpu.pipeline_mode<synchronous>, transform_indices = @transform_4, window_bounds = array<i64: 8, 128>}]} {
    %c0_i32 = arith.constant 0 : i32
    %0 = arith.cmpi eq, %arg0, %c0_i32 : i32
    %1 = arith.extui %0 : i1 to i32
    %c0_i32_0 = arith.constant 0 : i32
    %2 = arith.cmpi ne, %1, %c0_i32_0 : i32
    scf.if %2 {
      %cst_16 = arith.constant 0.000000e+00 : f32
      %37 = vector.broadcast %cst_16 : f32 to vector<8x128xf32>
      %c0_17 = arith.constant 0 : index
      %c0_18 = arith.constant 0 : index
      %38 = vector.load %arg6[%c0_17, %c0_18] : memref<8x128xf32, #tpu.memory_space<vmem>>, vector<8x128xf32>
      tpu.vector_store %arg6[%c0_17, %c0_18], %37 {strides = array<i32>} : memref<8x128xf32, #tpu.memory_space<vmem>>, vector<8x128xf32>,
    } else {
    }
    %c0 = arith.constant 0 : index
    %c0_1 = arith.constant 0 : index
    %3 = vector.load %arg1[%c0, %c0_1] : memref<8x128xf32, #tpu.memory_space<vmem>>, vector<8x128xf32>
    %c0_2 = arith.constant 0 : index
    %c0_3 = arith.constant 0 : index
    %4 = vector.load %arg2[%c0_2, %c0_3] : memref<8x128xf32, #tpu.memory_space<vmem>>, vector<8x128xf32>
    %c0_4 = arith.constant 0 : index
    %c0_5 = arith.constant 0 : index
    %5 = vector.load %arg3[%c0_4, %c0_5] : memref<8x128xf32, #tpu.memory_space<vmem>>, vector<8x128xf32>
    %c0_6 = arith.constant 0 : index
    %c0_7 = arith.constant 0 : index
    %6 = vector.load %arg4[%c0_6, %c0_7] : memref<8x128xf32, #tpu.memory_space<vmem>>, vector<8x128xf32>
    %7 = arith.minimumf %3, %4 : vector<8x128xf32>
    %8 = arith.maximumf %3, %4 : vector<8x128xf32>
    %9 = arith.minimumf %5, %6 : vector<8x128xf32>
    %10 = arith.maximumf %5, %6 : vector<8x128xf32>
    %11 = arith.subf %9, %7 : vector<8x128xf32>
    %12 = arith.subf %10, %8 : vector<8x128xf32>
    %13 = math.absf %11 : vector<8x128xf32>
    %14 = math.absf %12 : vector<8x128xf32>
    %15 = arith.addf %13, %14 : vector<8x128xf32>
    %16 = arith.subf %12, %11 : vector<8x128xf32>
    %17 = math.absf %16 : vector<8x128xf32>
    %cst = arith.constant 1.000000e-01 : f32
    %18 = vector.broadcast %cst : f32 to vector<8x128xf32>
    %19 = arith.mulf %18, %17 : vector<8x128xf32>
    %20 = arith.addf %15, %19 : vector<8x128xf32>
    %c8_i32 = arith.constant 8 : i32
    %21 = arith.muli %arg0, %c8_i32 : i32
    %22 = tpu.iota {dimensions = array<i32: 0>} : vector<8x128xi32>
    %23 = vector.broadcast %21 : i32 to vector<8x128xi32>
    %24 = arith.addi %23, %22 : vector<8x128xi32>
    %c3_i32 = arith.constant 3 : i32
    %25 = vector.broadcast %c3_i32 : i32 to vector<8x128xi32>
    %26 = arith.cmpi slt, %24, %25 : vector<8x128xi32>
    %cst_8 = arith.constant 0.000000e+00 : f32
    %27 = vector.broadcast %cst_8 : f32 to vector<8x128xf32>
    %28 = arith.select %26, %20, %27 : vector<8x128xi1>, vector<8x128xf32>
    %c0_9 = arith.constant 0 : index
    %c0_10 = arith.constant 0 : index
    %29 = vector.load %arg6[%c0_9, %c0_10] : memref<8x128xf32, #tpu.memory_space<vmem>>, vector<8x128xf32>
    %30 = vector.shape_cast %28 : vector<8x128xf32> to vector<1x8x128xf32>
    %cst_11 = arith.constant dense<0.000000e+00> : vector<8x128xf32>
    %31 = vector.multi_reduction <add>, %30, %cst_11 [0] : vector<1x8x128xf32> to vector<8x128xf32>
    %32 = arith.addf %29, %31 : vector<8x128xf32>
    %c0_12 = arith.constant 0 : index
    %c0_13 = arith.constant 0 : index
    %33 = vector.load %arg6[%c0_12, %c0_13] : memref<8x128xf32, #tpu.memory_space<vmem>>, vector<8x128xf32>
    tpu.vector_store %arg6[%c0_12, %c0_13], %32 {strides = array<i32>} : memref<8x128xf32, #tpu.memory_space<vmem>>, vector<8x128xf32>,
    %c0_i32_14 = arith.constant 0 : i32
    %34 = arith.cmpi eq, %arg0, %c0_i32_14 : i32
    %35 = arith.extui %34 : i1 to i32
    %c0_i32_15 = arith.constant 0 : i32
    %36 = arith.cmpi ne, %35, %c0_i32_15 : i32
    scf.if %36 {
      %c0_16 = arith.constant 0 : index
      %c0_17 = arith.constant 0 : index
      %37 = vector.load %arg6[%c0_16, %c0_17] : memref<8x128xf32, #tpu.memory_space<vmem>>, vector<8x128xf32>
      %c0_18 = arith.constant 0 : index
      %c0_19 = arith.constant 0 : index
      %38 = vector.load %arg5[%c0_18, %c0_19] : memref<8x128xf32, #tpu.memory_space<vmem>>, vector<8x128xf32>
      tpu.vector_store %arg5[%c0_18, %c0_19], %37 {strides = array<i32>} : memref<8x128xf32, #tpu.memory_space<vmem>>, vector<8x128xf32>,
    } else {
    }
    return
  }
  func.func @transform_0(%arg0: i32) -> (i32, i32) {
    %c0_i32 = arith.constant 0 : i32
    %c0_i32_0 = arith.constant 0 : i32
    return %arg0, %c0_i32 : i32, i32
  }
  func.func @transform_1(%arg0: i32) -> (i32, i32) {
    %c0_i32 = arith.constant 0 : i32
    %c0_i32_0 = arith.constant 0 : i32
    return %arg0, %c0_i32 : i32, i32
  }
  func.func @transform_2(%arg0: i32) -> (i32, i32) {
    %c0_i32 = arith.constant 0 : i32
    %c0_i32_0 = arith.constant 0 : i32
    return %arg0, %c0_i32 : i32, i32
  }
  func.func @transform_3(%arg0: i32) -> (i32, i32) {
    %c0_i32 = arith.constant 0 : i32
    %c0_i32_0 = arith.constant 0 : i32
    return %arg0, %c0_i32 : i32, i32
  }
  func.func @transform_4(%arg0: i32) -> (i32, i32) {
    %c0_i32 = arith.constant 0 : i32
    %c0_i32_0 = arith.constant 0 : i32
    %c0_i32_1 = arith.constant 0 : i32
    return %c0_i32, %c0_i32_0 : i32, i32
  }
}

</mosaic_0001>

<llo_original>
// kernel: tpu_custom_call.1
$region0: #{tpu_custom_call.1}
  #allocation0 [shape = 'u32[]', space=smem, size = 0x4, offset = 0x4, fixed_abs, tag = 'smem constant byte address 0x4 - core index']
  #allocation1 [shape = 'u32[72,128]{1,0:T(1,128)}', space=vmem, size = 0x9000, scoped, tag = 'internal scratch']
  #allocation2 [shape = 'f32[8,128]{1,0:T(8,128)}', space=vmem, size = 0x1000, scoped, tag = 'scratch operand']
  %s0 = inlined_call_operand.hbm [shape: f32[3,128], index: 0, kind: input, shape index: {}]
  %s1 = inlined_call_operand.hbm [shape: f32[3,128], index: 1, kind: input, shape index: {}]
  %s2 = inlined_call_operand.hbm [shape: f32[3,128], index: 2, kind: input, shape index: {}]
  %s3 = inlined_call_operand.hbm [shape: f32[3,128], index: 3, kind: input, shape index: {}]
  %s4 = inlined_call_operand.hbm [shape: f32[8,128], index: 4, kind: output, shape index: {}]
  %s5 = sld [smem:[#allocation0]]
  $region50: #{tpu_custom_call.1} parent=0
    _
  %s7 = ssub.s32 1, %s5
  %s8 = scalar_select 0, %s7, %s5
  $region1: #{tpu_custom_call.1} parent=0
    #allocation3 [shape = 'u8[4096]{0}', space=vmem, size = 0x1000, scoped, tag = 'input window, operand 0, single buffered']
    #allocation4 [shape = 's32[1]{0}', space=sflag, size = 0x4, scoped, tag = 'scoped memory for tpu_custom_call.1']
    #allocation5 [shape = 's32[1]{0}', space=sflag, size = 0x4, scoped, tag = 'scoped memory for tpu_custom_call.1']
    #allocation6 [shape = 'u8[4096]{0}', space=vmem, size = 0x1000, scoped, tag = 'input window, operand 1, single buffered']
    #allocation7 [shape = 's32[1]{0}', space=sflag, size = 0x4, scoped, tag = 'scoped memory for tpu_custom_call.1']
    #allocation8 [shape = 'u8[4096]{0}', space=vmem, size = 0x1000, scoped, tag = 'input window, operand 2, single buffered']
    #allocation9 [shape = 'u8[4096]{0}', space=vmem, size = 0x1000, scoped, tag = 'input window, operand 3, single buffered']
    #allocation10 [shape = 's32[1]{0}', space=sflag, size = 0x4, scoped, tag = 'scoped memory for tpu_custom_call.1']
    #allocation11 [shape = 'u8[4096]{0}', space=vmem, size = 0x1000, scoped, tag = 'output window, operand 0, single buffered']
    %9 = vsyncpa [#allocation4], 0
    %10 = vsyncpa [#allocation7], 0
    %11 = vsyncpa [#allocation10], 0
    %12 = vsyncpa [#allocation5], 0
    // Predicated region
    $region2: #{tpu_custom_call.1} parent=1 // pred_check
      _
    $region3: #{tpu_custom_call.1} parent=1 // pred_check_branch
      %14 = sbr.rel (0) target = $region5
    $region4: #{tpu_custom_call.1} parent=1 // pred_region
      %16 = vsyncadd [#allocation4], 64
      %s17 = sshll.u32 %s0, 4
      %s18 = int_to_ptr.hbm [resolvable:$true] %s17
      %s19 = sshll.u32 [#allocation3], 4
      %s20 = int_to_ptr.vmem [resolvable:$true] %s19
      %25 = dma.hbm_to_vmem [thread:$0]  %s18, 64, %s20, [#allocation4], 64, 64, 4
    $region5: #{tpu_custom_call.1} parent=1 // pred_fallthru
      _
    // Predicated region
    $region6: #{tpu_custom_call.1} parent=1 // pred_check
      _
    $region7: #{tpu_custom_call.1} parent=1 // pred_check_branch
      %27 = sbr.rel (0) target = $region9
    $region8: #{tpu_custom_call.1} parent=1 // pred_region
      %29 = vsyncadd [#allocation7], 64
      %s30 = sshll.u32 %s1, 4
      %s31 = int_to_ptr.hbm [resolvable:$true] %s30
      %s32 = sshll.u32 [#allocation6], 4
      %s33 = int_to_ptr.vmem [resolvable:$true] %s32
      %38 = dma.hbm_to_vmem [thread:$0]  %s31, 64, %s33, [#allocation7], 64, 64, 4
    $region9: #{tpu_custom_call.1} parent=1 // pred_fallthru
      _
    // Predicated region
    $region10: #{tpu_custom_call.1} parent=1 // pred_check
      _
    $region11: #{tpu_custom_call.1} parent=1 // pred_check_branch
      %40 = sbr.rel (0) target = $region13
    $region12: #{tpu_custom_call.1} parent=1 // pred_region
      %42 = vsyncadd [#allocation7], 64
      %s43 = sshll.u32 %s2, 4
      %s44 = int_to_ptr.hbm [resolvable:$true] %s43
      %s45 = sshll.u32 [#allocation8], 4
      %s46 = int_to_ptr.vmem [resolvable:$true] %s45
      %51 = dma.hbm_to_vmem [thread:$0]  %s44, 64, %s46, [#allocation7], 64, 64, 4
    $region13: #{tpu_custom_call.1} parent=1 // pred_fallthru
      _
    // Predicated region
    $region14: #{tpu_custom_call.1} parent=1 // pred_check
      _
    $region15: #{tpu_custom_call.1} parent=1 // pred_check_branch
      %53 = sbr.rel (0) target = $region17
    $region16: #{tpu_custom_call.1} parent=1 // pred_region
      %55 = vsyncadd [#allocation10], 64
      %s56 = sshll.u32 %s3, 4
      %s57 = int_to_ptr.hbm [resolvable:$true] %s56
      %s58 = sshll.u32 [#allocation9], 4
      %s59 = int_to_ptr.vmem [resolvable:$true] %s58
      %64 = dma.hbm_to_vmem [thread:$0]  %s57, 64, %s59, [#allocation10], 64, 64, 4
    $region17: #{tpu_custom_call.1} parent=1 // pred_fallthru
      _
    // Predicated region
    $region18: #{tpu_custom_call.1} parent=1 // pred_check
      _
    $region19: #{tpu_custom_call.1} parent=1 // pred_check_branch
      %66 = sbr.rel (0) target = $region21
    $region20: #{tpu_custom_call.1} parent=1 // pred_region
      %68 = dma.done [#allocation4], 128
    $region21: #{tpu_custom_call.1} parent=1 // pred_fallthru
      _
    // Predicated region
    $region22: #{tpu_custom_call.1} parent=1 // pred_check
      _
    $region23: #{tpu_custom_call.1} parent=1 // pred_check_branch
      %70 = sbr.rel (0) target = $region25
    $region24: #{tpu_custom_call.1} parent=1 // pred_region
      %72 = dma.done [#allocation7], 128
    $region25: #{tpu_custom_call.1} parent=1 // pred_fallthru
      _
    // Predicated region
    $region26: #{tpu_custom_call.1} parent=1 // pred_check
      _
    $region27: #{tpu_custom_call.1} parent=1 // pred_check_branch
      %74 = sbr.rel (0) target = $region29
    $region28: #{tpu_custom_call.1} parent=1 // pred_region
      %76 = dma.done [#allocation7], 128
    $region29: #{tpu_custom_call.1} parent=1 // pred_fallthru
      _
    // Predicated region
    $region30: #{tpu_custom_call.1} parent=1 // pred_check
      _
    $region31: #{tpu_custom_call.1} parent=1 // pred_check_branch
      %78 = sbr.rel (0) target = $region33
    $region32: #{tpu_custom_call.1} parent=1 // pred_region
      %80 = dma.done [#allocation10], 128
    $region33: #{tpu_custom_call.1} parent=1 // pred_fallthru
      _
    %p81 = scmp.eq.s32.totalorder 0, 0
    // Predicated region
    $region34: #{tpu_custom_call.1} parent=1 // pred_check
      %p82 = pneg %p81
    $region35: #{tpu_custom_call.1} parent=1 // pred_check_branch
      %84 = sbr.rel (%p82) target = $region37
    $region36: #{tpu_custom_call.1} parent=1 // pred_region
      %85 = vst [vmem:[#allocation2] sm:$0xff] 0.0
    $region37: #{tpu_custom_call.1} parent=1 // pred_fallthru
      _
    %v86 = vld [vmem:[#allocation3] sm:$0xff]
    %v87 = vld [vmem:[#allocation6] sm:$0xff]
    %v88 = vld [vmem:[#allocation8] sm:$0xff]
    %v89 = vld [vmem:[#allocation9] sm:$0xff]
    %v90 = vmin.f32 %v86, %v87
    %v91 = vmax.f32 %v86, %v87
    %v92 = vmin.f32 %v88, %v89
    %v93 = vmax.f32 %v88, %v89
    %v94 = vsub.f32 %v92, %v90
    %v95 = vsub.f32 %v93, %v91
    %v96 = vand.u32 2147483647, %v94
    %v97 = vand.u32 2147483647, %v95
    %v98 = vadd.f32 %v96, %v97
    %v99 = vsub.f32 %v95, %v94
    %v100 = vand.u32 2147483647, %v99
    %v101 = vmul.f32 %v100, 0.1
    %v102 = vadd.f32 %v98, %v101
    %s103 = smul.u32 0, 8
    %v104 = vlaneseq
    %v105 = vshrl.u32 %v104, 7
    %v106 = vstv %s103
    %v107 = vadd.s32 %v106, %v105
    %vm108 = vcmp.lt.s32.totalorder %v107, 3
    %v109 = vsel %vm108, %v102, 0.0
    %v110 = vld [vmem:[#allocation2] sm:$0xff]
    %v111 = vadd.f32 %v109, 0.0
    %v112 = vadd.f32 %v110, %v111
    %113 = vst [vmem:[#allocation2] sm:$0xff] %v112
    // Predicated region
    $region38: #{tpu_custom_call.1} parent=1 // pred_check
      %p114 = pneg %p81
    $region39: #{tpu_custom_call.1} parent=1 // pred_check_branch
      %116 = sbr.rel (%p114) target = $region41
    $region40: #{tpu_custom_call.1} parent=1 // pred_region
      %v117 = vld [vmem:[#allocation2] sm:$0xff]
      %118 = vst [vmem:[#allocation11] sm:$0xff] %v117
    $region41: #{tpu_custom_call.1} parent=1 // pred_fallthru
      _
    // Predicated region
    $region42: #{tpu_custom_call.1} parent=1 // pred_check
      _
    $region43: #{tpu_custom_call.1} parent=1 // pred_check_branch
      %120 = sbr.rel (0) target = $region45
    $region44: #{tpu_custom_call.1} parent=1 // pred_region
      %122 = vsyncadd [#allocation5], 0
      %s124 = sshll.u32 [#allocation11], 4
      %s125 = int_to_ptr.vmem [resolvable:$true] %s124
      %s126 = sshll.u32 %s4, 4
      %s127 = int_to_ptr.hbm [resolvable:$true] %s126
      %129 = dma.vmem_to_hbm [thread:$0]  %s125, 128, %s127, [#allocation5]
    $region45: #{tpu_custom_call.1} parent=1 // pred_fallthru
      _
    // Predicated region
    $region46: #{tpu_custom_call.1} parent=1 // pred_check
      _
    $region47: #{tpu_custom_call.1} parent=1 // pred_check_branch
      %131 = sbr.rel (0) target = $region49
    $region48: #{tpu_custom_call.1} parent=1 // pred_region
      %133 = dma.done [#allocation5], 128
    $region49: #{tpu_custom_call.1} parent=1 // pred_fallthru
      _
    %134 = vsyncpa [#allocation4], 1
    %135 = vsyncpa [#allocation7], 1
    %136 = vsyncpa [#allocation10], 1
    %137 = vsyncpa [#allocation5], 1

</llo_original>
